<compile_context>
chip_gen: v6e
topology: v6e:2x2x1
jax: 0.10.0
libtpu: 0.0.40
codegen_flags: <defaults>
</compile_context>

<pallas_src>
import math

import jax
import jax.numpy as jnp
from jax.experimental import pallas as pl
from jax.experimental.pallas import tpu as pltpu


def _round_up(n: int, m: int) -> int:
    return ((n + m - 1) // m) * m


def _sigmoid(z):
    # EUP-friendly sigmoid: exp and (approximate) reciprocal both go to the EUP
    # slot, leaving the VALU free.  Falls back to a divide on older jax.
    e = jnp.exp(-z)
    if hasattr(pl, "reciprocal"):
        return pl.reciprocal(1.0 + e, approx=True)
    return 1.0 / (1.0 + e)


def _block_diag(w, p):
    """(k, n) -> (p*k, p*n) block-diagonal with p copies of w on the diagonal."""
    if p == 1:
        return w
    k, n = w.shape
    eye = jnp.eye(p, dtype=w.dtype)
    return (eye[:, None, :, None] * w[None, :, None, :]).reshape(p * k, p * n)


def _dcn_kernel(x_ref, w1_ref, b1_ref, w2_ref, b2_ref, w3_ref, b3_ref, o_ref):
    # x tile is f32 in the packed (TB/p, p*in) layout; cast to bf16 in-kernel.
    xb = x_ref[...].astype(jnp.bfloat16)

    # Layer 1: bf16 matmul (block-diagonal W1'), f32 accumulate, bias+ReLU in f32.
    h1 = jnp.dot(xb, w1_ref[...], preferred_element_type=jnp.float32)
    h1 = jnp.maximum(h1 + b1_ref[...], 0.0)

    # Layer 2: same policy, stays in the packed layout.
    h2 = jnp.dot(h1.astype(jnp.bfloat16), w2_ref[...],
                 preferred_element_type=jnp.float32)
    h2 = jnp.maximum(h2 + b2_ref[...], 0.0)

    # Output layer: block-diagonal W3' keeps the packed layout (p*out lanes),
    # so no transpose and no 1-lane masked stores.
    z = jnp.dot(h2.astype(jnp.bfloat16), w3_ref[...],
                preferred_element_type=jnp.float32)
    z = z + b3_ref[...]
    o_ref[...] = _sigmoid(z).astype(o_ref.dtype)


def dcn_forward(x, w1, b1, w2, b2, w3, b3, *, block_batch: int = 4096):
    """Fused DCN forward. x: (B, in) f32. Weights: (in, out). Biases: (out,)."""
    B, in_size = x.shape
    h1_size = w1.shape[1]
    h2_size = w2.shape[1]
    out_size = w3.shape[1]
    f32, bf16 = jnp.float32, jnp.bfloat16

    # Pack factor: fold p batch rows per packed row so the contraction dims hit
    # K ~ 128-256 on the MXU (p=8 for in=16/h=32). Degenerates to p=1 for wide
    # layers (>=256), where the MXU is already filled.
    widest = max(in_size, h1_size, h2_size)
    p = max(1, min(128, 256 // widest))

    # Batch tile: 128-aligned (and tb/p a multiple of 8); large tiles amortize
    # per-grid-step overhead; keep >= 2 tiles when B allows (v7x megacore).
    align = math.lcm(128, 8 * p)
    if B <= align:
        tb = align
    else:
        tb = min(_round_up(block_batch, align), _round_up(-(-B // 2), align))
    b_pad = _round_up(B, tb)
    num_tiles = b_pad // tb
    rows = b_pad // p        # packed row count
    tr = tb // p             # packed rows per tile

    if b_pad != B:
        # Only hit when B % tb != 0 (a full copy of x); for large batches pick
        # block_batch so it divides B and this pad is skipped entirely.
        x = jnp.pad(x, ((0, b_pad - B), (0, 0)))

    # Free (bitcast) reshape: p consecutive batch rows share one packed row.
    # x stays f32 here; the bf16 cast happens inside the kernel.
    x_packed = x.reshape(rows, p * in_size)

    # Resident block-diagonal weights (bf16) and tiled biases (f32). Tiny; DMA'd
    # into VMEM once thanks to constant index_maps.
    w1p = _block_diag(w1.astype(bf16), p)                    # (p*in, p*h1)
    w2p = _block_diag(w2.astype(bf16), p)                    # (p*h1, p*h2)
    w3p = _block_diag(w3.astype(bf16), p)                    # (p*h2, p*out)
    b1p = jnp.tile(b1.astype(f32), p).reshape(1, p * h1_size)
    b2p = jnp.tile(b2.astype(f32), p).reshape(1, p * h2_size)
    b3p = jnp.tile(b3.astype(f32), p).reshape(1, p * out_size)

    def resident(a):
        zeros = (0,) * a.ndim
        return pl.BlockSpec(a.shape, lambda i: zeros)

    out_packed = pl.pallas_call(
        _dcn_kernel,
        out_shape=jax.ShapeDtypeStruct((rows, p * out_size), f32),
        grid=(num_tiles,),
        in_specs=[pl.BlockSpec((tr, p * in_size), lambda i: (i, 0)),
                  resident(w1p), resident(b1p),
                  resident(w2p), resident(b2p),
                  resident(w3p), resident(b3p)],
        out_specs=pl.BlockSpec((tr, p * out_size), lambda i: (i, 0)),
        compiler_params=pltpu.CompilerParams(
            dimension_semantics=("parallel",)),
    )(x_packed, w1p, b1p, w2p, b2p, w3p, b3p)

    # Unpack: (rows, p*out) -> (b_pad, out); drop padded rows.
    return out_packed.reshape(b_pad, out_size)[:B]


def reference_forward_f32(x, w1, b1, w2, b2, w3, b3):
    h1 = jax.nn.relu(x @ w1 + b1)
    h2 = jax.nn.relu(h1 @ w2 + b2)
    return jax.nn.sigmoid(h2 @ w3 + b3)


def reference_forward_matched(x, w1, b1, w2, b2, w3, b3):
    """Pure-jnp reference with the kernel's bf16-matmul / f32-accumulate policy."""
    bf16, f32 = jnp.bfloat16, jnp.float32
    h1 = jnp.dot(x.astype(bf16), w1.astype(bf16), preferred_element_type=f32)
    h1 = jnp.maximum(h1 + b1, 0.0)
    h2 = jnp.dot(h1.astype(bf16), w2.astype(bf16), preferred_element_type=f32)
    h2 = jnp.maximum(h2 + b2, 0.0)
    z = jnp.dot(h2.astype(bf16), w3.astype(bf16), preferred_element_type=f32) + b3
    return jax.nn.sigmoid(z)


if __name__ == "__main__":
    # Small shapes consistent with DCN(input_size, h1, h2, output_size).
    batch = 256
    input_size = 16
    h1_size = 32
    h2_size = 32
    output_size = 1

    key = jax.random.PRNGKey(0)
    ks = jax.random.split(key, 7)

    x = jax.random.normal(ks[0], (batch, input_size), dtype=jnp.float32)
    w1 = jax.random.uniform(ks[1], (input_size, h1_size), jnp.float32, -0.25, 0.25)
    b1 = jax.random.uniform(ks[2], (h1_size,), jnp.float32, -0.25, 0.25)
    w2 = jax.random.uniform(ks[3], (h1_size, h2_size), jnp.float32, -0.18, 0.18)
    b2 = jax.random.uniform(ks[4], (h2_size,), jnp.float32, -0.18, 0.18)
    w3 = jax.random.uniform(ks[5], (h2_size, output_size), jnp.float32, -0.18, 0.18)
    b3 = jax.random.uniform(ks[6], (output_size,), jnp.float32, -0.18, 0.18)

    # Test 1: output_size = 1 (DCN predict() case), 2-tile grid, packed output.
    out = jax.block_until_ready(dcn_forward(x, w1, b1, w2, b2, w3, b3))
    assert out.shape == (batch, output_size)
    ref_bf = reference_forward_matched(x, w1, b1, w2, b2, w3, b3)
    ref_f32 = reference_forward_f32(x, w1, b1, w2, b2, w3, b3)
    assert jnp.allclose(out, ref_bf, atol=2e-3, rtol=2e-3)
    assert jnp.allclose(out, ref_f32, atol=3e-2, rtol=3e-2)

    # Test 2: output_size > 1 plus a ragged batch (exercises padding path).
    out_size2 = 4
    batch2 = 100
    k2 = jax.random.split(jax.random.PRNGKey(1), 3)
    x2 = jax.random.normal(k2[0], (batch2, input_size), dtype=jnp.float32)
    w3b = jax.random.uniform(k2[1], (h2_size, out_size2), jnp.float32, -0.18, 0.18)
    b3b = jax.random.uniform(k2[2], (out_size2,), jnp.float32, -0.18, 0.18)
    out2 = jax.block_until_ready(dcn_forward(x2, w1, b1, w2, b2, w3b, b3b))
    assert out2.shape == (batch2, out_size2)
    ref2 = reference_forward_matched(x2, w1, b1, w2, b2, w3b, b3b)
    assert jnp.allclose(out2, ref2, atol=2e-3, rtol=2e-3)

    print("KERNEL_OK")
</pallas_src>

<mosaic_0001>
module attributes {stable_mosaic.version = 11 : i64} {
  func.func @_dcn_kernel(%arg0: i32, %arg1: memref<16x128xf32, #tpu.memory_space<vmem>>, %arg2: memref<128x256xbf16, #tpu.memory_space<vmem>>, %arg3: memref<1x256xf32, #tpu.memory_space<vmem>>, %arg4: memref<256x256xbf16, #tpu.memory_space<vmem>>, %arg5: memref<1x256xf32, #tpu.memory_space<vmem>>, %arg6: memref<256x8xbf16, #tpu.memory_space<vmem>>, %arg7: memref<1x8xf32, #tpu.memory_space<vmem>>, %arg8: memref<16x8xf32, #tpu.memory_space<vmem>>) attributes {dimension_semantics = [#tpu.dimension_semantics<parallel>], iteration_bounds = array<i64: 2>, scalar_prefetch = 0 : i64, scratch_operands = 0 : i64, tpu.core_type = #tpu.core_type<tc>, window_params = [{transform_indices = @transform_0, window_bounds = array<i64: 16, 128>}, {pipeline_mode = #tpu.pipeline_mode<synchronous>, transform_indices = @transform_1, window_bounds = array<i64: 128, 256>}, {pipeline_mode = #tpu.pipeline_mode<synchronous>, transform_indices = @transform_2, window_bounds = array<i64: 1, 256>}, {pipeline_mode = #tpu.pipeline_mode<synchronous>, transform_indices = @transform_3, window_bounds = array<i64: 256, 256>}, {pipeline_mode = #tpu.pipeline_mode<synchronous>, transform_indices = @transform_4, window_bounds = array<i64: 1, 256>}, {pipeline_mode = #tpu.pipeline_mode<synchronous>, transform_indices = @transform_5, window_bounds = array<i64: 256, 8>}, {pipeline_mode = #tpu.pipeline_mode<synchronous>, transform_indices = @transform_6, window_bounds = array<i64: 1, 8>}, {transform_indices = @transform_7, window_bounds = array<i64: 16, 8>}]} {
    %c0 = arith.constant 0 : index
    %c0_0 = arith.constant 0 : index
    %0 = vector.load %arg1[%c0, %c0_0] : memref<16x128xf32, #tpu.memory_space<vmem>>, vector<16x128xf32>
    %1 = arith.truncf %0 : vector<16x128xf32> to vector<16x128xbf16>
    %c0_1 = arith.constant 0 : index
    %c0_2 = arith.constant 0 : index
    %2 = vector.load %arg2[%c0_1, %c0_2] : memref<128x256xbf16, #tpu.memory_space<vmem>>, vector<128x256xbf16>
    %cst = arith.constant dense<0.000000e+00> : vector<16x256xf32>
    %3 = tpu.matmul %1, %2, %cst {dimension_numbers = #tpu.dot_dimension_numbers<[1], [0], [0], [1], [0, 0, 1, 1], [], []>} : vector<16x128xbf16>, vector<128x256xbf16>, vector<16x256xf32> -> vector<16x256xf32>
    %c0_3 = arith.constant 0 : index
    %c0_4 = arith.constant 0 : index
    %4 = vector.load %arg3[%c0_3, %c0_4] : memref<1x256xf32, #tpu.memory_space<vmem>>, vector<1x256xf32>
    %5 = vector.broadcast %4 : vector<1x256xf32> to vector<16x256xf32>
    %6 = arith.addf %3, %5 : vector<16x256xf32>
    %cst_5 = arith.constant 0.000000e+00 : f32
    %7 = vector.broadcast %cst_5 : f32 to vector<16x256xf32>
    %8 = arith.maximumf %6, %7 : vector<16x256xf32>
    %9 = arith.truncf %8 : vector<16x256xf32> to vector<16x256xbf16>
    %c0_6 = arith.constant 0 : index
    %c0_7 = arith.constant 0 : index
    %10 = vector.load %arg4[%c0_6, %c0_7] : memref<256x256xbf16, #tpu.memory_space<vmem>>, vector<256x256xbf16>
    %cst_8 = arith.constant dense<0.000000e+00> : vector<16x256xf32>
    %11 = tpu.matmul %9, %10, %cst_8 {dimension_numbers = #tpu.dot_dimension_numbers<[1], [0], [0], [1], [0, 0, 1, 1], [], []>} : vector<16x256xbf16>, vector<256x256xbf16>, vector<16x256xf32> -> vector<16x256xf32>
    %c0_9 = arith.constant 0 : index
    %c0_10 = arith.constant 0 : index
    %12 = vector.load %arg5[%c0_9, %c0_10] : memref<1x256xf32, #tpu.memory_space<vmem>>, vector<1x256xf32>
    %13 = vector.broadcast %12 : vector<1x256xf32> to vector<16x256xf32>
    %14 = arith.addf %11, %13 : vector<16x256xf32>
    %cst_11 = arith.constant 0.000000e+00 : f32
    %15 = vector.broadcast %cst_11 : f32 to vector<16x256xf32>
    %16 = arith.maximumf %14, %15 : vector<16x256xf32>
    %17 = arith.truncf %16 : vector<16x256xf32> to vector<16x256xbf16>
    %c0_12 = arith.constant 0 : index
    %c0_13 = arith.constant 0 : index
    %18 = vector.load %arg6[%c0_12, %c0_13] : memref<256x8xbf16, #tpu.memory_space<vmem>>, vector<256x8xbf16>
    %cst_14 = arith.constant dense<0.000000e+00> : vector<16x8xf32>
    %19 = tpu.matmul %17, %18, %cst_14 {dimension_numbers = #tpu.dot_dimension_numbers<[1], [0], [0], [1], [0, 0, 1, 1], [], []>} : vector<16x256xbf16>, vector<256x8xbf16>, vector<16x8xf32> -> vector<16x8xf32>
    %c0_15 = arith.constant 0 : index
    %c0_16 = arith.constant 0 : index
    %20 = vector.load %arg7[%c0_15, %c0_16] : memref<1x8xf32, #tpu.memory_space<vmem>>, vector<1x8xf32>
    %21 = vector.broadcast %20 : vector<1x8xf32> to vector<16x8xf32>
    %22 = arith.addf %19, %21 : vector<16x8xf32>
    %cst_17 = arith.constant 0.000000e+00 : f32
    %23 = vector.broadcast %cst_17 : f32 to vector<16x8xf32>
    %24 = arith.subf %23, %22 : vector<16x8xf32>
    %25 = math.exp %24 : vector<16x8xf32>
    %cst_18 = arith.constant 1.000000e+00 : f32
    %26 = vector.broadcast %cst_18 : f32 to vector<16x8xf32>
    %27 = arith.addf %26, %25 : vector<16x8xf32>
    %28 = tpu.reciprocal %27 {approx = true} : vector<16x8xf32> -> vector<16x8xf32>
    %c0_19 = arith.constant 0 : index
    %c0_20 = arith.constant 0 : index
    %29 = vector.load %arg8[%c0_19, %c0_20] : memref<16x8xf32, #tpu.memory_space<vmem>>, vector<16x8xf32>
    tpu.vector_store %arg8[%c0_19, %c0_20], %28 {strides = array<i32>} : memref<16x8xf32, #tpu.memory_space<vmem>>, vector<16x8xf32>,
    return
  }
  func.func @transform_0(%arg0: i32) -> (i32, i32) {
    %c0_i32 = arith.constant 0 : i32
    %c0_i32_0 = arith.constant 0 : i32
    return %arg0, %c0_i32 : i32, i32
  }
  func.func @transform_1(%arg0: i32) -> (i32, i32) {
    %c0_i32 = arith.constant 0 : i32
    %c0_i32_0 = arith.constant 0 : i32
    %c0_i32_1 = arith.constant 0 : i32
    return %c0_i32, %c0_i32_0 : i32, i32
  }
  func.func @transform_2(%arg0: i32) -> (i32, i32) {
    %c0_i32 = arith.constant 0 : i32
    %c0_i32_0 = arith.constant 0 : i32
    %c0_i32_1 = arith.constant 0 : i32
    return %c0_i32, %c0_i32_0 : i32, i32
  }
  func.func @transform_3(%arg0: i32) -> (i32, i32) {
    %c0_i32 = arith.constant 0 : i32
    %c0_i32_0 = arith.constant 0 : i32
    %c0_i32_1 = arith.constant 0 : i32
    return %c0_i32, %c0_i32_0 : i32, i32
  }
  func.func @transform_4(%arg0: i32) -> (i32, i32) {
    %c0_i32 = arith.constant 0 : i32
    %c0_i32_0 = arith.constant 0 : i32
    %c0_i32_1 = arith.constant 0 : i32
    return %c0_i32, %c0_i32_0 : i32, i32
  }
  func.func @transform_5(%arg0: i32) -> (i32, i32) {
    %c0_i32 = arith.constant 0 : i32
    %c0_i32_0 = arith.constant 0 : i32
    %c0_i32_1 = arith.constant 0 : i32
    return %c0_i32, %c0_i32_0 : i32, i32
  }
  func.func @transform_6(%arg0: i32) -> (i32, i32) {
    %c0_i32 = arith.constant 0 : i32
    %c0_i32_0 = arith.constant 0 : i32
    %c0_i32_1 = arith.constant 0 : i32
    return %c0_i32, %c0_i32_0 : i32, i32
  }
  func.func @transform_7(%arg0: i32) -> (i32, i32) {
    %c0_i32 = arith.constant 0 : i32
    %c0_i32_0 = arith.constant 0 : i32
    return %arg0, %c0_i32 : i32, i32
  }
}

</mosaic_0001>

<llo_original>
// kernel: tpu_custom_call.1
$region0: #{tpu_custom_call.1}
  #allocation0 [shape = 'u32[]', space=smem, size = 0x4, offset = 0x4, fixed_abs, tag = 'smem constant byte address 0x4 - core index']
  #allocation1 [shape = 'u32[144,128]{1,0:T(1,128)}', space=vmem, size = 0x12000, scoped, tag = 'internal scratch']
  %s0 = inlined_call_operand.hbm [shape: f32[32,128], index: 0, kind: input, shape index: {}]
  %s1 = inlined_call_operand.vmem [shape: bf16[128,256], index: 1, kind: input, shape index: {}]
  %s2 = inlined_call_operand.vmem [shape: f32[1,256], index: 2, kind: input, shape index: {}]
  %s3 = inlined_call_operand.hbm [shape: bf16[256,256], index: 3, kind: input, shape index: {}]
  %s4 = inlined_call_operand.vmem [shape: f32[1,256], index: 4, kind: input, shape index: {}]
  %s5 = inlined_call_operand.vmem [shape: bf16[256,8], index: 5, kind: input, shape index: {}]
  %s6 = inlined_call_operand.vmem [shape: f32[1,8], index: 6, kind: input, shape index: {}]
  %s7 = inlined_call_operand.vmem [shape: f32[32,8], index: 7, kind: output, shape index: {}]
  %s8 = sld [smem:[#allocation0]]
  $region69: #{tpu_custom_call.1} parent=0
    _
  %s10 = ssub.s32 1, %s8
  %s11 = scalar_select 0, %s10, %s8
  $region1: #{tpu_custom_call.1} parent=0
    #allocation2 [shape = 'u8[16384]{0}', space=vmem, size = 0x4000, scoped, tag = 'input window, operand 0']
    #allocation3 [shape = 's32[2]{0}', space=sflag, size = 0x8, scoped, tag = 'scoped memory for tpu_custom_call.1']
    #allocation4 [shape = 'u8[131072]{0}', space=vmem, size = 0x20000, scoped, tag = 'input window, operand 3, single buffered']
    #allocation5 [shape = 's32[1]{0}', space=sflag, size = 0x4, scoped, tag = 'scoped memory for tpu_custom_call.1']
    %12 = vsyncpa [#allocation3], 0
    %s13 = scalar_lea.sflag [#allocation3], 1
    %14 = vsyncpa %s13, 0
    %15 = vsyncpa [#allocation5], 0
    loop: start=0, step=1, limit=4
    $region2: #{tpu_custom_call.1} parent=1 // loop_pre_header
      _
    $region3: #{tpu_custom_call.1} parent=1 // loop_header
      %s17 = sphi 0, %s21
      %p18 = scmp.ge.s32.totalorder %s17, 4
      %s27 = sphi 0, %s29
      %s30 = sphi 0, %s27
      %s31 = sphi 0, %s30
      %s47 = sphi 0, %s31
      %s51 = sphi 0, %s51
      %s53 = sphi 0, %s51
      %s54 = sphi 0, %s53
      %s68 = sphi 0, %s54
      %s72 = sphi 0, %s72
      %s74 = sphi 0, %s72
      %s75 = sphi 0, %s74
      %s89 = sphi 0, %s75
      %s93 = sphi 0, %s93
      %s95 = sphi 0, %s93
      %s96 = sphi 0, %s95
      %s110 = sphi 0, %s96
      %s114 = sphi 0, %s114
      %s116 = sphi 0, %s114
      %s117 = sphi 0, %s116
      %s131 = sphi 0, %s117
      %s135 = sphi 0, %s135
      %s137 = sphi 0, %s135
      %s138 = sphi 0, %s137
      %s152 = sphi 0, %s138
      %s156 = sphi 0, %s156
      %s158 = sphi 0, %s156
      %s159 = sphi 0, %s158
      %s173 = sphi 0, %s159
      %s179 = sphi 0, %s181
      %s182 = sphi 0, %s179
      %s183 = sphi 0, %s182
      %s199 = sphi 0, %s183
    $region4: #{tpu_custom_call.1} parent=1 // loop_header_branch
      %20 = sbr.rel (%p18) target = $region8
    $region5: #{tpu_custom_call.1} parent=1 // loop_body
      %s22 = ssub.s32 %s17, 1
      %s23 = ssub.s32 %s17, 2
      %s24 = sadd.s32 %s17, 1
      %s25 = ssub.s32 %s17, %s24
      %p26 = scmp.eq.s32.totalorder %s25, 0
      %s28 = sadd.s32 %s27, 1
      %s29 = scalar_select %p26, %s27, %s28
      %p32 = pneg %p26
      %p33 = scmp.eq.s32.totalorder %s17, 1
      %p34 = por %p32, %p33
      %p35 = scmp.ne.s32.totalorder %s27, %s30
      %p36 = scmp.eq.s32.totalorder %s17, 0
      %p37 = por %p35, %p36
      %p38 = scmp.ne.s32.totalorder %s27, %s30
      %p39 = scmp.eq.s32.totalorder %s22, 1
      %p40 = por %p38, %p39
      %p41 = scmp.ne.s32.totalorder %s30, %s31
      %p42 = scmp.eq.s32.totalorder %s22, 0
      %p43 = por %p41, %p42
      %p44 = scmp.ne.s32.totalorder %s30, %s31
      %p45 = scmp.eq.s32.totalorder %s23, 1
      %p46 = por %p44, %p45
      %p48 = scmp.ne.s32.totalorder %s31, %s47
      %p49 = scmp.eq.s32.totalorder %s23, 0
      %p50 = por %p48, %p49
      %s52 = sadd.s32 %s51, 1
      %p55 = scmp.eq.s32.totalorder %s17, 1
      %p56 = scmp.ne.s32.totalorder %s51, %s53
      %p57 = scmp.eq.s32.totalorder %s17, 0
      %p58 = por %p56, %p57
      %p59 = scmp.ne.s32.totalorder %s51, %s53
      %p60 = scmp.eq.s32.totalorder %s22, 1
      %p61 = por %p59, %p60
      %p62 = scmp.ne.s32.totalorder %s53, %s54
      %p63 = scmp.eq.s32.totalorder %s22, 0
      %p64 = por %p62, %p63
      %p65 = scmp.ne.s32.totalorder %s53, %s54
      %p66 = scmp.eq.s32.totalorder %s23, 1
      %p67 = por %p65, %p66
      %p69 = scmp.ne.s32.totalorder %s54, %s68
      %p70 = scmp.eq.s32.totalorder %s23, 0
      %p71 = por %p69, %p70
      %s73 = sadd.s32 %s72, 1
      %p76 = scmp.eq.s32.totalorder %s17, 1
      %p77 = scmp.ne.s32.totalorder %s72, %s74
      %p78 = scmp.eq.s32.totalorder %s17, 0
      %p79 = por %p77, %p78
      %p80 = scmp.ne.s32.totalorder %s72, %s74
      %p81 = scmp.eq.s32.totalorder %s22, 1
      %p82 = por %p80, %p81
      %p83 = scmp.ne.s32.totalorder %s74, %s75
      %p84 = scmp.eq.s32.totalorder %s22, 0
      %p85 = por %p83, %p84
      %p86 = scmp.ne.s32.totalorder %s74, %s75
      %p87 = scmp.eq.s32.totalorder %s23, 1
      %p88 = por %p86, %p87
      %p90 = scmp.ne.s32.totalorder %s75, %s89
      %p91 = scmp.eq.s32.totalorder %s23, 0
      %p92 = por %p90, %p91
      %s94 = sadd.s32 %s93, 1
      %p97 = scmp.eq.s32.totalorder %s17, 1
      %p98 = scmp.ne.s32.totalorder %s93, %s95
      %p99 = scmp.eq.s32.totalorder %s17, 0
      %p100 = por %p98, %p99
      %p101 = scmp.ne.s32.totalorder %s93, %s95
      %p102 = scmp.eq.s32.totalorder %s22, 1
      %p103 = por %p101, %p102
      %p104 = scmp.ne.s32.totalorder %s95, %s96
      %p105 = scmp.eq.s32.totalorder %s22, 0
      %p106 = por %p104, %p105
      %p107 = scmp.ne.s32.totalorder %s95, %s96
      %p108 = scmp.eq.s32.totalorder %s23, 1
      %p109 = por %p107, %p108
      %p111 = scmp.ne.s32.totalorder %s96, %s110
      %p112 = scmp.eq.s32.totalorder %s23, 0
      %p113 = por %p111, %p112
      %s115 = sadd.s32 %s114, 1
      %p118 = scmp.eq.s32.totalorder %s17, 1
      %p119 = scmp.ne.s32.totalorder %s114, %s116
      %p120 = scmp.eq.s32.totalorder %s17, 0
      %p121 = por %p119, %p120
      %p122 = scmp.ne.s32.totalorder %s114, %s116
      %p123 = scmp.eq.s32.totalorder %s22, 1
      %p124 = por %p122, %p123
      %p125 = scmp.ne.s32.totalorder %s116, %s117
      %p126 = scmp.eq.s32.totalorder %s22, 0
      %p127 = por %p125, %p126
      %p128 = scmp.ne.s32.totalorder %s116, %s117
      %p129 = scmp.eq.s32.totalorder %s23, 1
      %p130 = por %p128, %p129
      %p132 = scmp.ne.s32.totalorder %s117, %s131
      %p133 = scmp.eq.s32.totalorder %s23, 0
      %p134 = por %p132, %p133
      %s136 = sadd.s32 %s135, 1
      %p139 = scmp.eq.s32.totalorder %s17, 1
      %p140 = scmp.ne.s32.totalorder %s135, %s137
      %p141 = scmp.eq.s32.totalorder %s17, 0
      %p142 = por %p140, %p141
      %p143 = scmp.ne.s32.totalorder %s135, %s137
      %p144 = scmp.eq.s32.totalorder %s22, 1
      %p145 = por %p143, %p144
      %p146 = scmp.ne.s32.totalorder %s137, %s138
      %p147 = scmp.eq.s32.totalorder %s22, 0
      %p148 = por %p146, %p147
      %p149 = scmp.ne.s32.totalorder %s137, %s138
      %p150 = scmp.eq.s32.totalorder %s23, 1
      %p151 = por %p149, %p150
      %p153 = scmp.ne.s32.totalorder %s138, %s152
      %p154 = scmp.eq.s32.totalorder %s23, 0
      %p155 = por %p153, %p154
      %s157 = sadd.s32 %s156, 1
      %p160 = scmp.eq.s32.totalorder %s17, 1
      %p161 = scmp.ne.s32.totalorder %s156, %s158
      %p162 = scmp.eq.s32.totalorder %s17, 0
      %p163 = por %p161, %p162
      %p164 = scmp.ne.s32.totalorder %s156, %s158
      %p165 = scmp.eq.s32.totalorder %s22, 1
      %p166 = por %p164, %p165
      %p167 = scmp.ne.s32.totalorder %s158, %s159
      %p168 = scmp.eq.s32.totalorder %s22, 0
      %p169 = por %p167, %p168
      %p170 = scmp.ne.s32.totalorder %s158, %s159
      %p171 = scmp.eq.s32.totalorder %s23, 1
      %p172 = por %p170, %p171
      %p174 = scmp.ne.s32.totalorder %s159, %s173
      %p175 = scmp.eq.s32.totalorder %s23, 0
      %p176 = por %p174, %p175
      %s177 = ssub.s32 %s17, %s24
      %p178 = scmp.eq.s32.totalorder %s177, 0
      %s180 = sadd.s32 %s179, 1
      %s181 = scalar_select %p178, %s179, %s180
      %p184 = pneg %p178
      %p185 = scmp.eq.s32.totalorder %s17, 1
      %p186 = por %p184, %p185
      %p187 = scmp.ne.s32.totalorder %s179, %s182
      %p188 = scmp.eq.s32.totalorder %s17, 0
      %p189 = por %p187, %p188
      %p190 = scmp.ne.s32.totalorder %s179, %s182
      %p191 = scmp.eq.s32.totalorder %s22, 1
      %p192 = por %p190, %p191
      %p193 = scmp.ne.s32.totalorder %s182, %s183
      %p194 = scmp.eq.s32.totalorder %s22, 0
      %p195 = por %p193, %p194
      %p196 = scmp.ne.s32.totalorder %s182, %s183
      %p197 = scmp.eq.s32.totalorder %s23, 1
      %p198 = por %p196, %p197
      %p200 = scmp.ne.s32.totalorder %s183, %s199
      %p201 = scmp.eq.s32.totalorder %s23, 0
      %p202 = por %p200, %p201
      %p203 = scmp.le.s32.totalorder 1, %s17
      %p204 = scmp.lt.s32.totalorder %s17, 3
      %p205 = pnand %p203, %p204
      %p206 = pneg %p205
      // Predicated region
      $region9: #{tpu_custom_call.1} parent=5 // pred_check
        _
      $region10: #{tpu_custom_call.1} parent=5 // pred_check_branch
        %208 = sbr.rel (%p205) target = $region12
      $region11: #{tpu_custom_call.1} parent=5 // pred_region
        %s209 = ssub.s32 %s17, 1
        // Predicated region
        $region13: #{tpu_custom_call.1} parent=11 // pred_check
          %p210 = pneg %p64
        $region14: #{tpu_custom_call.1} parent=11 // pred_check_branch
          %212 = sbr.rel (%p210) target = $region16
        $region15: #{tpu_custom_call.1} parent=11 // pred_region
          _
        $region16: #{tpu_custom_call.1} parent=11 // pred_fallthru
          _
        // Predicated region
        $region17: #{tpu_custom_call.1} parent=11 // pred_check
          %p213 = pneg %p85
        $region18: #{tpu_custom_call.1} parent=11 // pred_check_branch
          %215 = sbr.rel (%p213) target = $region20
        $region19: #{tpu_custom_call.1} parent=11 // pred_region
          _
        $region20: #{tpu_custom_call.1} parent=11 // pred_fallthru
          _
        // Predicated region
        $region21: #{tpu_custom_call.1} parent=11 // pred_check
          %p216 = pneg %p106
        $region22: #{tpu_custom_call.1} parent=11 // pred_check_branch
          %218 = sbr.rel (%p216) target = $region24
        $region23: #{tpu_custom_call.1} parent=11 // pred_region
          %s220 = ssub.s32 4096, 4096
          %221 = vsyncadd [#allocation5], %s220
          %s222 = sshll.u32 [#allocation4], 4
          %s223 = int_to_ptr.vmem [resolvable:$true] %s222
          %228 = dma.hbm_to_vmem [thread:$0]  %s3, 4096, %s223, [#allocation5], 128, 128, 8
        $region24: #{tpu_custom_call.1} parent=11 // pred_fallthru
          _
        // Predicated region
        $region25: #{tpu_custom_call.1} parent=11 // pred_check
          %p229 = pneg %p127
        $region26: #{tpu_custom_call.1} parent=11 // pred_check_branch
          %231 = sbr.rel (%p229) target = $region28
        $region27: #{tpu_custom_call.1} parent=11 // pred_region
          _
        $region28: #{tpu_custom_call.1} parent=11 // pred_fallthru
          _
        // Predicated region
        $region29: #{tpu_custom_call.1} parent=11 // pred_check
          %p232 = pneg %p148
        $region30: #{tpu_custom_call.1} parent=11 // pred_check_branch
          %234 = sbr.rel (%p232) target = $region32
        $region31: #{tpu_custom_call.1} parent=11 // pred_region
          _
        $region32: #{tpu_custom_call.1} parent=11 // pred_fallthru
          _
        // Predicated region
        $region33: #{tpu_custom_call.1} parent=11 // pred_check
          %p235 = pneg %p169
        $region34: #{tpu_custom_call.1} parent=11 // pred_check_branch
          %237 = sbr.rel (%p235) target = $region36
        $region35: #{tpu_custom_call.1} parent=11 // pred_region
          _
        $region36: #{tpu_custom_call.1} parent=11 // pred_fallthru
          _
      $region12: #{tpu_custom_call.1} parent=5 // pred_fallthru
        _
      %p238 = scmp.lt.s32.totalorder %s17, 2
      // Predicated region
      $region37: #{tpu_custom_call.1} parent=5 // pred_check
        %p239 = pneg %p238
      $region38: #{tpu_custom_call.1} parent=5 // pred_check_branch
        %241 = sbr.rel (%p239) target = $region40
      $region39: #{tpu_custom_call.1} parent=5 // pred_region
        // Predicated region
        $region41: #{tpu_custom_call.1} parent=39 // pred_check
          %p242 = pneg %p37
        $region42: #{tpu_custom_call.1} parent=39 // pred_check_branch
          %244 = sbr.rel (%p242) target = $region44
        $region43: #{tpu_custom_call.1} parent=39 // pred_region
          %s245 = sand.u32 %s27, 1
          %s246 = scalar_lea.sflag [#allocation3], %s245
          %s247 = sand.u32 %s27, 1
          %s248 = smul.addr %s247, 16
          %s249 = scalar_lea.vmem [#allocation2], %s248
          %s250 = smul.u32 2, %s17
          %s252 = ssub.s32 256, 256
          %253 = vsyncadd %s246, %s252
          %s254 = smul.addr %s250, 128
          %s255 = scalar_lea.hbm %s0, %s254
          %s256 = sshll.u32 %s249, 4
          %s257 = int_to_ptr.vmem [resolvable:$true] %s256
          %262 = dma.hbm_to_vmem [thread:$0]  %s255, 256, %s257, %s246, 128, 128, 8
        $region44: #{tpu_custom_call.1} parent=39 // pred_fallthru
          _
      $region40: #{tpu_custom_call.1} parent=5 // pred_fallthru
        _
      %p263 = scmp.le.s32.totalorder 1, %s17
      %p264 = scmp.lt.s32.totalorder %s17, 3
      %p265 = pnand %p263, %p264
      %p266 = pneg %p265
      // Predicated region
      $region45: #{tpu_custom_call.1} parent=5 // pred_check
        _
      $region46: #{tpu_custom_call.1} parent=5 // pred_check_branch
        %268 = sbr.rel (%p265) target = $region48
      $region47: #{tpu_custom_call.1} parent=5 // pred_region
        %s269 = ssub.s32 %s17, 1
        %s270 = sand.u32 %s30, 1
        %s271 = scalar_lea.sflag [#allocation3], %s270
        %s272 = sand.u32 %s30, 1
        %s273 = smul.addr %s272, 16
        %s274 = scalar_lea.vmem [#allocation2], %s273
        // Predicated region
        $region49: #{tpu_custom_call.1} parent=47 // pred_check
          %p275 = pneg %p43
        $region50: #{tpu_custom_call.1} parent=47 // pred_check_branch
          %277 = sbr.rel (%p275) target = $region52
        $region51: #{tpu_custom_call.1} parent=47 // pred_region
          %278 = dma.done %s271, 256
        $region52: #{tpu_custom_call.1} parent=47 // pred_fallthru
          _
        // Predicated region
        $region53: #{tpu_custom_call.1} parent=47 // pred_check
          %p279 = pneg %p106
        $region54: #{tpu_custom_call.1} parent=47 // pred_check_branch
          %281 = sbr.rel (%p279) target = $region56
        $region55: #{tpu_custom_call.1} parent=47 // pred_region
          %282 = dma.done [#allocation5], 4096
        $region56: #{tpu_custom_call.1} parent=47 // pred_fallthru
          _
        %s283 = sand.u32 %s30, 1
        %s284 = scalar_lea.sflag [#allocation3], %s283
        %s285 = sand.u32 %s30, 1
        %s286 = smul.addr %s285, 16
        %s287 = scalar_lea.vmem [#allocation2], %s286
        %p288 = pneg %p43
        %p289 = pneg %p40
        %p290 = pneg %p64
        %p291 = pneg %p61
        %p292 = pneg %p85
        %p293 = pneg %p82
        %p294 = pneg %p106
        %p295 = pneg %p103
        %p296 = pneg %p127
        %p297 = pneg %p124
        %p298 = pneg %p148
        %p299 = pneg %p145
        %p300 = pneg %p169
        %p301 = pneg %p166
        %p302 = pneg %p195
        %p303 = pneg %p192
        %s304 = smul.u32 2, %s22
        %p305 = scmp.lt.s32.totalorder %s304, 3
        %s306 = scalar_select %p305, %s304, 3
        %s307 = smul.addr %s306, 8
        %s308 = scalar_lea.vmem %s7, %s307
        %s309 = smul.u32 2, %s22
        %s310 = smul.u32 2, %s22
        %p311 = scmp.lt.s32.totalorder %s310, 3
        %s312 = scalar_select %p311, %s310, 3
        %s313 = smul.addr %s312, 8
        %s314 = scalar_lea.vmem %s7, %s313
        %s315 = smul.u32 2, %s22
        %v317 = vld [vmem:[%s274] sm:$0xff]
        %v318 = vld [vmem:[%s274 + $0x8] sm:$0xff]
        %v319 = vpack.c.bf16 %v318, %v317
        %v320 = vld [vmem:[%s1] sm:$0xff]
        %v321 = vld [vmem:[%s1 + $0x8] sm:$0xff]
        %v322 = vld [vmem:[%s1 + $0x10] sm:$0xff]
        %v323 = vld [vmem:[%s1 + $0x18] sm:$0xff]
        %v324 = vld [vmem:[%s1 + $0x20] sm:$0xff]
        %v325 = vld [vmem:[%s1 + $0x28] sm:$0xff]
        %v326 = vld [vmem:[%s1 + $0x30] sm:$0xff]
        %v327 = vld [vmem:[%s1 + $0x38] sm:$0xff]
        %v328 = vld [vmem:[%s1 + $0x40] sm:$0xff]
        %v329 = vld [vmem:[%s1 + $0x48] sm:$0xff]
        %v330 = vld [vmem:[%s1 + $0x50] sm:$0xff]
        %v331 = vld [vmem:[%s1 + $0x58] sm:$0xff]
        %v332 = vld [vmem:[%s1 + $0x60] sm:$0xff]
        %v333 = vld [vmem:[%s1 + $0x68] sm:$0xff]
        %v334 = vld [vmem:[%s1 + $0x70] sm:$0xff]
        %v335 = vld [vmem:[%s1 + $0x78] sm:$0xff]
        %v336 = vld [vmem:[%s2] sm:$0x3]
        %v338 = vlaneseq
        %v339 = vshrl.u32 %v338, 7
        %v340 = vsub.s32 0, %v339
        %v341 = vrot.slane %v336, %v340
        %v342 = vlaneseq
        %v343 = vshrl.u32 %v342, 7
        %v344 = vsub.s32 1, %v343
        %v345 = vrot.slane %v336, %v344
        %v364 = vunpack.c.l.b16 %v320
        %v365 = vunpack.c.h.b16 %v320
        %v366 = vunpack.c.l.b16 %v321
        %v367 = vunpack.c.h.b16 %v321
        %v368 = vunpack.c.l.b16 %v322
        %v369 = vunpack.c.h.b16 %v322
        %v370 = vunpack.c.l.b16 %v323
        %v371 = vunpack.c.h.b16 %v323
        %v372 = vunpack.c.l.b16 %v324
        %v373 = vunpack.c.h.b16 %v324
        %v374 = vunpack.c.l.b16 %v325
        %v375 = vunpack.c.h.b16 %v325
        %v376 = vunpack.c.l.b16 %v326
        %v377 = vunpack.c.h.b16 %v326
        %v378 = vunpack.c.l.b16 %v327
        %v379 = vunpack.c.h.b16 %v327
        %v380 = vunpack.c.l.b16 %v328
        %v381 = vunpack.c.h.b16 %v328
        %v382 = vunpack.c.l.b16 %v329
        %v383 = vunpack.c.h.b16 %v329
        %v384 = vunpack.c.l.b16 %v330
        %v385 = vunpack.c.h.b16 %v330
        %v386 = vunpack.c.l.b16 %v331
        %v387 = vunpack.c.h.b16 %v331
        %v388 = vunpack.c.l.b16 %v332
        %v389 = vunpack.c.h.b16 %v332
        %v390 = vunpack.c.l.b16 %v333
        %v391 = vunpack.c.h.b16 %v333
        %v392 = vunpack.c.l.b16 %v334
        %v393 = vunpack.c.h.b16 %v334
        %v394 = vunpack.c.l.b16 %v335
        %v395 = vunpack.c.h.b16 %v335
        %v396 = vpack.c.b16 %v366, %v364
        %v397 = vpack.c.b16 %v367, %v365
        %v398 = vpack.c.b16 %v370, %v368
        %v399 = vpack.c.b16 %v371, %v369
        %v400 = vpack.c.b16 %v374, %v372
        %v401 = vpack.c.b16 %v375, %v373
        %v402 = vpack.c.b16 %v378, %v376
        %v403 = vpack.c.b16 %v379, %v377
        %v404 = vpack.c.b16 %v382, %v380
        %v405 = vpack.c.b16 %v383, %v381
        %v406 = vpack.c.b16 %v386, %v384
        %v407 = vpack.c.b16 %v387, %v385
        %v408 = vpack.c.b16 %v390, %v388
        %v409 = vpack.c.b16 %v391, %v389
        %v410 = vpack.c.b16 %v394, %v392
        %v411 = vpack.c.b16 %v395, %v393
        %428 = vmatprep.subr.bf16.mxu0 %v411
        %429 = vmatpush1.bf16.msra.mxu0 %v410
        %430 = vmatprep.subr.bf16.mxu0 %v409
        %431 = vmatpush1.bf16.msra.mxu0 %v408
        %432 = vmatprep.subr.bf16.mxu0 %v407
        %433 = vmatpush1.bf16.msra.mxu0 %v406
        %434 = vmatprep.subr.bf16.mxu0 %v405
        %435 = vmatpush1.bf16.msra.mxu0 %v404
        %436 = vmatprep.subr.bf16.mxu0 %v403
        %437 = vmatpush1.bf16.msra.mxu0 %v402
        %438 = vmatprep.subr.bf16.mxu0 %v401
        %439 = vmatpush1.bf16.msra.mxu0 %v400
        %440 = vmatprep.subr.bf16.mxu0 %v399
        %441 = vmatpush1.bf16.msra.mxu0 %v398
        %442 = vmatprep.subr.bf16.mxu0 %v397
        %443 = vmatpush1.bf16.msra.mxu0 %v396
        %444 = vmatprep.subr.bf16.mxu0 0
        %445 = vmatpush2.bf16.msra.mxu0 0
        %446 = vmatprep.subr.bf16.mxu0 0
        %447 = vmatpush2.bf16.msra.mxu0 0
        %448 = vmatprep.subr.bf16.mxu0 0
        %449 = vmatpush2.bf16.msra.mxu0 0
        %450 = vmatprep.subr.bf16.mxu0 0
        %451 = vmatpush2.bf16.msra.mxu0 0
        %452 = vmatprep.subr.bf16.mxu0 0
        %453 = vmatpush2.bf16.msra.mxu0 0
        %454 = vmatprep.subr.bf16.mxu0 0
        %455 = vmatpush2.bf16.msra.mxu0 0
        %456 = vmatprep.subr.bf16.mxu0 0
        %457 = vmatpush2.bf16.msra.mxu0 0
        %458 = vmatprep.subr.bf16.mxu0 0
        %459 = vmatpush2.bf16.msra.mxu0 0
        %460 = vmatprep.mubr.bf16.mxu0 0
        %461 = vmatmul.mubr.bf16.gmra.mxu0 %v319
        %v462 = vpop.f32.mrf.mxu0
        %v463 = vadd.f32 %v341, %v462
        %v464 = vpop.f32.mrf.mxu0
        %v465 = vadd.f32 %v345, %v464
        %v466 = vpop.f32.mrf.mxu0
        %v467 = vadd.f32 %v341, %v466
        %v468 = vpop.f32.mrf.mxu0
        %v469 = vadd.f32 %v345, %v468
        %470 = vdwg.mxu0
        %v471 = vmax.f32 %v463, 0.0
        %v472 = vmax.f32 %v465, 0.0
        %v473 = vmax.f32 %v467, 0.0
        %v474 = vmax.f32 %v469, 0.0
        %v475 = vpack.c.bf16 %v473, %v471
        %v476 = vpack.c.bf16 %v474, %v472
        %v477 = vld [vmem:[#allocation4] sm:$0xff]
        %v478 = vld [vmem:[#allocation4 + $0x8] sm:$0xff]
        %v479 = vld [vmem:[#allocation4 + $0x10] sm:$0xff]
        %v480 = vld [vmem:[#allocation4 + $0x18] sm:$0xff]
        %v481 = vld [vmem:[#allocation4 + $0x20] sm:$0xff]
        %v482 = vld [vmem:[#allocation4 + $0x28] sm:$0xff]
        %v483 = vld [vmem:[#allocation4 + $0x30] sm:$0xff]
        %v484 = vld [vmem:[#allocation4 + $0x38] sm:$0xff]
        %v485 = vld [vmem:[#allocation4 + $0x40] sm:$0xff]
        %v486 = vld [vmem:[#allocation4 + $0x48] sm:$0xff]
        %v487 = vld [vmem:[#allocation4 + $0x50] sm:$0xff]
        %v488 = vld [vmem:[#allocation4 + $0x58] sm:$0xff]
        %v489 = vld [vmem:[#allocation4 + $0x60] sm:$0xff]
        %v490 = vld [vmem:[#allocation4 + $0x68] sm:$0xff]
        %v491 = vld [vmem:[#allocation4 + $0x70] sm:$0xff]
        %v492 = vld [vmem:[#allocation4 + $0x78] sm:$0xff]
        %v493 = vld [vmem:[#allocation4 + $0x80] sm:$0xff]
        %v494 = vld [vmem:[#allocation4 + $0x88] sm:$0xff]
        %v495 = vld [vmem:[#allocation4 + $0x90] sm:$0xff]
        %v496 = vld [vmem:[#allocation4 + $0x98] sm:$0xff]
        %v497 = vld [vmem:[#allocation4 + $0xa0] sm:$0xff]
        %v498 = vld [vmem:[#allocation4 + $0xa8] sm:$0xff]
        %v499 = vld [vmem:[#allocation4 + $0xb0] sm:$0xff]
        %v500 = vld [vmem:[#allocation4 + $0xb8] sm:$0xff]
        %v501 = vld [vmem:[#allocation4 + $0xc0] sm:$0xff]
        %v502 = vld [vmem:[#allocation4 + $0xc8] sm:$0xff]
        %v503 = vld [vmem:[#allocation4 + $0xd0] sm:$0xff]
        %v504 = vld [vmem:[#allocation4 + $0xd8] sm:$0xff]
        %v505 = vld [vmem:[#allocation4 + $0xe0] sm:$0xff]
        %v506 = vld [vmem:[#allocation4 + $0xe8] sm:$0xff]
        %v507 = vld [vmem:[#allocation4 + $0xf0] sm:$0xff]
        %v508 = vld [vmem:[#allocation4 + $0xf8] sm:$0xff]
        %v509 = vld [vmem:[%s4] sm:$0x3]
        %v511 = vlaneseq
        %v512 = vshrl.u32 %v511, 7
        %v513 = vsub.s32 0, %v512
        %v514 = vrot.slane %v509, %v513
        %v515 = vlaneseq
        %v516 = vshrl.u32 %v515, 7
        %v517 = vsub.s32 1, %v516
        %v518 = vrot.slane %v509, %v517
        %v553 = vunpack.c.l.b16 %v477
        %v554 = vunpack.c.h.b16 %v477
        %v555 = vunpack.c.l.b16 %v478
        %v556 = vunpack.c.h.b16 %v478
        %v557 = vunpack.c.l.b16 %v479
        %v558 = vunpack.c.h.b16 %v479
        %v559 = vunpack.c.l.b16 %v480
        %v560 = vunpack.c.h.b16 %v480
        %v561 = vunpack.c.l.b16 %v481
        %v562 = vunpack.c.h.b16 %v481
        %v563 = vunpack.c.l.b16 %v482
        %v564 = vunpack.c.h.b16 %v482
        %v565 = vunpack.c.l.b16 %v483
        %v566 = vunpack.c.h.b16 %v483
        %v567 = vunpack.c.l.b16 %v484
        %v568 = vunpack.c.h.b16 %v484
        %v569 = vunpack.c.l.b16 %v485
        %v570 = vunpack.c.h.b16 %v485
        %v571 = vunpack.c.l.b16 %v486
        %v572 = vunpack.c.h.b16 %v486
        %v573 = vunpack.c.l.b16 %v487
        %v574 = vunpack.c.h.b16 %v487
        %v575 = vunpack.c.l.b16 %v488
        %v576 = vunpack.c.h.b16 %v488
        %v577 = vunpack.c.l.b16 %v489
        %v578 = vunpack.c.h.b16 %v489
        %v579 = vunpack.c.l.b16 %v490
        %v580 = vunpack.c.h.b16 %v490
        %v581 = vunpack.c.l.b16 %v491
        %v582 = vunpack.c.h.b16 %v491
        %v583 = vunpack.c.l.b16 %v492
        %v584 = vunpack.c.h.b16 %v492
        %v585 = vunpack.c.l.b16 %v493
        %v586 = vunpack.c.h.b16 %v493
        %v587 = vunpack.c.l.b16 %v494
        %v588 = vunpack.c.h.b16 %v494
        %v589 = vunpack.c.l.b16 %v495
        %v590 = vunpack.c.h.b16 %v495
        %v591 = vunpack.c.l.b16 %v496
        %v592 = vunpack.c.h.b16 %v496
        %v593 = vunpack.c.l.b16 %v497
        %v594 = vunpack.c.h.b16 %v497
        %v595 = vunpack.c.l.b16 %v498
        %v596 = vunpack.c.h.b16 %v498
        %v597 = vunpack.c.l.b16 %v499
        %v598 = vunpack.c.h.b16 %v499
        %v599 = vunpack.c.l.b16 %v500
        %v600 = vunpack.c.h.b16 %v500
        %v601 = vunpack.c.l.b16 %v501
        %v602 = vunpack.c.h.b16 %v501
        %v603 = vunpack.c.l.b16 %v502
        %v604 = vunpack.c.h.b16 %v502
        %v605 = vunpack.c.l.b16 %v503
        %v606 = vunpack.c.h.b16 %v503
        %v607 = vunpack.c.l.b16 %v504
        %v608 = vunpack.c.h.b16 %v504
        %v609 = vunpack.c.l.b16 %v505
        %v610 = vunpack.c.h.b16 %v505
        %v611 = vunpack.c.l.b16 %v506
        %v612 = vunpack.c.h.b16 %v506
        %v613 = vunpack.c.l.b16 %v507
        %v614 = vunpack.c.h.b16 %v507
        %v615 = vunpack.c.l.b16 %v508
        %v616 = vunpack.c.h.b16 %v508
        %v617 = vpack.c.b16 %v555, %v553
        %v618 = vpack.c.b16 %v556, %v554
        %v619 = vpack.c.b16 %v559, %v557
        %v620 = vpack.c.b16 %v560, %v558
        %v621 = vpack.c.b16 %v563, %v561
        %v622 = vpack.c.b16 %v564, %v562
        %v623 = vpack.c.b16 %v567, %v565
        %v624 = vpack.c.b16 %v568, %v566
        %v625 = vpack.c.b16 %v571, %v569
        %v626 = vpack.c.b16 %v572, %v570
        %v627 = vpack.c.b16 %v575, %v573
        %v628 = vpack.c.b16 %v576, %v574
        %v629 = vpack.c.b16 %v579, %v577
        %v630 = vpack.c.b16 %v580, %v578
        %v631 = vpack.c.b16 %v583, %v581
        %v632 = vpack.c.b16 %v584, %v582
        %v633 = vpack.c.b16 %v587, %v585
        %v634 = vpack.c.b16 %v588, %v586
        %v635 = vpack.c.b16 %v591, %v589
        %v636 = vpack.c.b16 %v592, %v590
        %v637 = vpack.c.b16 %v595, %v593
        %v638 = vpack.c.b16 %v596, %v594
        %v639 = vpack.c.b16 %v599, %v597
        %v640 = vpack.c.b16 %v600, %v598
        %v641 = vpack.c.b16 %v603, %v601
        %v642 = vpack.c.b16 %v604, %v602
        %v643 = vpack.c.b16 %v607, %v605
        %v644 = vpack.c.b16 %v608, %v606
        %v645 = vpack.c.b16 %v611, %v609
        %v646 = vpack.c.b16 %v612, %v610
        %v647 = vpack.c.b16 %v615, %v613
        %v648 = vpack.c.b16 %v616, %v614
        %681 = vmatprep.subr.bf16.mxu0 %v632
        %682 = vmatpush1.bf16.msra.mxu0 %v631
        %683 = vmatprep.subr.bf16.mxu0 %v630
        %684 = vmatpush1.bf16.msra.mxu0 %v629
        %685 = vmatprep.subr.bf16.mxu0 %v628
        %686 = vmatpush1.bf16.msra.mxu0 %v627
        %687 = vmatprep.subr.bf16.mxu0 %v626
        %688 = vmatpush1.bf16.msra.mxu0 %v625
        %689 = vmatprep.subr.bf16.mxu0 %v624
        %690 = vmatpush1.bf16.msra.mxu0 %v623
        %691 = vmatprep.subr.bf16.mxu0 %v622
        %692 = vmatpush1.bf16.msra.mxu0 %v621
        %693 = vmatprep.subr.bf16.mxu0 %v620
        %694 = vmatpush1.bf16.msra.mxu0 %v619
        %695 = vmatprep.subr.bf16.mxu0 %v618
        %696 = vmatpush1.bf16.msra.mxu0 %v617
        %697 = vmatprep.subr.bf16.mxu0 %v648
        %698 = vmatpush2.bf16.msra.mxu0 %v647
        %699 = vmatprep.subr.bf16.mxu0 %v646
        %700 = vmatpush2.bf16.msra.mxu0 %v645
        %701 = vmatprep.subr.bf16.mxu0 %v644
        %702 = vmatpush2.bf16.msra.mxu0 %v643
        %703 = vmatprep.subr.bf16.mxu0 %v642
        %704 = vmatpush2.bf16.msra.mxu0 %v641
        %705 = vmatprep.subr.bf16.mxu0 %v640
        %706 = vmatpush2.bf16.msra.mxu0 %v639
        %707 = vmatprep.subr.bf16.mxu0 %v638
        %708 = vmatpush2.bf16.msra.mxu0 %v637
        %709 = vmatprep.subr.bf16.mxu0 %v636
        %710 = vmatpush2.bf16.msra.mxu0 %v635
        %711 = vmatprep.subr.bf16.mxu0 %v634
        %712 = vmatpush2.bf16.msra.mxu0 %v633
        %713 = vmatprep.mubr.bf16.mxu0 %v476
        %714 = vmatmul.mubr.bf16.gmra.mxu0 %v475
        %v715 = vpop.f32.mrf.mxu0
        %v716 = vadd.f32 %v514, %v715
        %v717 = vpop.f32.mrf.mxu0
        %v718 = vadd.f32 %v518, %v717
        %v719 = vpop.f32.mrf.mxu0
        %v720 = vadd.f32 %v514, %v719
        %v721 = vpop.f32.mrf.mxu0
        %v722 = vadd.f32 %v518, %v721
        %723 = vdwg.mxu0
        %v724 = vmax.f32 %v716, 0.0
        %v725 = vmax.f32 %v718, 0.0
        %v726 = vmax.f32 %v720, 0.0
        %v727 = vmax.f32 %v722, 0.0
        %v728 = vpack.c.bf16 %v726, %v724
        %v729 = vpack.c.bf16 %v727, %v725
        %v730 = vld [vmem:[%s5] sm:$0xf]
        %v731 = vld [vmem:[%s5 + $0x4] sm:$0xf]
        %v732 = vld [vmem:[%s5 + $0x8] sm:$0xf]
        %v733 = vld [vmem:[%s5 + $0xc] sm:$0xf]
        %v734 = vld [vmem:[%s5 + $0x10] sm:$0xf]
        %v735 = vld [vmem:[%s5 + $0x14] sm:$0xf]
        %v736 = vld [vmem:[%s5 + $0x18] sm:$0xf]
        %v737 = vld [vmem:[%s5 + $0x1c] sm:$0xf]
        %v738 = vld [vmem:[%s5 + $0x20] sm:$0xf]
        %v739 = vld [vmem:[%s5 + $0x24] sm:$0xf]
        %v740 = vld [vmem:[%s5 + $0x28] sm:$0xf]
        %v741 = vld [vmem:[%s5 + $0x2c] sm:$0xf]
        %v742 = vld [vmem:[%s5 + $0x30] sm:$0xf]
        %v743 = vld [vmem:[%s5 + $0x34] sm:$0xf]
        %v744 = vld [vmem:[%s5 + $0x38] sm:$0xf]
        %v745 = vld [vmem:[%s5 + $0x3c] sm:$0xf]
        %v746 = vld [vmem:[%s5 + $0x40] sm:$0xf]
        %v747 = vld [vmem:[%s5 + $0x44] sm:$0xf]
        %v748 = vld [vmem:[%s5 + $0x48] sm:$0xf]
        %v749 = vld [vmem:[%s5 + $0x4c] sm:$0xf]
        %v750 = vld [vmem:[%s5 + $0x50] sm:$0xf]
        %v751 = vld [vmem:[%s5 + $0x54] sm:$0xf]
        %v752 = vld [vmem:[%s5 + $0x58] sm:$0xf]
        %v753 = vld [vmem:[%s5 + $0x5c] sm:$0xf]
        %v754 = vld [vmem:[%s5 + $0x60] sm:$0xf]
        %v755 = vld [vmem:[%s5 + $0x64] sm:$0xf]
        %v756 = vld [vmem:[%s5 + $0x68] sm:$0xf]
        %v757 = vld [vmem:[%s5 + $0x6c] sm:$0xf]
        %v758 = vld [vmem:[%s5 + $0x70] sm:$0xf]
        %v759 = vld [vmem:[%s5 + $0x74] sm:$0xf]
        %v760 = vld [vmem:[%s5 + $0x78] sm:$0xf]
        %v761 = vld [vmem:[%s5 + $0x7c] sm:$0xf]
        %v762 = vld [vmem:[%s6] sm:$0x1]
        %v764 = vlaneseq
        %v765 = vshrl.u32 %v764, 7
        %v766 = vsub.s32 0, %v765
        %v767 = vrot.slane %v762, %v766
        %v801 = vunpack.c.l.b16 %v730
        %v802 = vunpack.c.l.b16 %v731
        %v803 = vunpack.c.l.b16 %v732
        %v804 = vunpack.c.l.b16 %v733
        %v805 = vunpack.c.l.b16 %v734
        %v806 = vunpack.c.l.b16 %v735
        %v807 = vunpack.c.l.b16 %v736
        %v808 = vunpack.c.l.b16 %v737
        %v809 = vunpack.c.l.b16 %v738
        %v810 = vunpack.c.l.b16 %v739
        %v811 = vunpack.c.l.b16 %v740
        %v812 = vunpack.c.l.b16 %v741
        %v813 = vunpack.c.l.b16 %v742
        %v814 = vunpack.c.l.b16 %v743
        %v815 = vunpack.c.l.b16 %v744
        %v816 = vunpack.c.l.b16 %v745
        %v817 = vunpack.c.l.b16 %v746
        %v818 = vunpack.c.l.b16 %v747
        %v819 = vunpack.c.l.b16 %v748
        %v820 = vunpack.c.l.b16 %v749
        %v821 = vunpack.c.l.b16 %v750
        %v822 = vunpack.c.l.b16 %v751
        %v823 = vunpack.c.l.b16 %v752
        %v824 = vunpack.c.l.b16 %v753
        %v825 = vunpack.c.l.b16 %v754
        %v826 = vunpack.c.l.b16 %v755
        %v827 = vunpack.c.l.b16 %v756
        %v828 = vunpack.c.l.b16 %v757
        %v829 = vunpack.c.l.b16 %v758
        %v830 = vunpack.c.l.b16 %v759
        %v831 = vunpack.c.l.b16 %v760
        %v832 = vunpack.c.l.b16 %v761
        %v833 = vpack.c.b16 %v802, %v801
        %v834 = vpack.c.b16 %v804, %v803
        %v835 = vpack.c.b16 %v806, %v805
        %v836 = vpack.c.b16 %v808, %v807
        %v837 = vpack.c.b16 %v810, %v809
        %v838 = vpack.c.b16 %v812, %v811
        %v839 = vpack.c.b16 %v814, %v813
        %v840 = vpack.c.b16 %v816, %v815
        %v841 = vpack.c.b16 %v818, %v817
        %v842 = vpack.c.b16 %v820, %v819
        %v843 = vpack.c.b16 %v822, %v821
        %v844 = vpack.c.b16 %v824, %v823
        %v845 = vpack.c.b16 %v826, %v825
        %v846 = vpack.c.b16 %v828, %v827
        %v847 = vpack.c.b16 %v830, %v829
        %v848 = vpack.c.b16 %v832, %v831
        %865 = vmatprep.subr.bf16.mxu0 0
        %866 = vmatpush1.bf16.msra.mxu0 %v840
        %867 = vmatprep.subr.bf16.mxu0 0
        %868 = vmatpush1.bf16.msra.mxu0 %v839
        %869 = vmatprep.subr.bf16.mxu0 0
        %870 = vmatpush1.bf16.msra.mxu0 %v838
        %871 = vmatprep.subr.bf16.mxu0 0
        %872 = vmatpush1.bf16.msra.mxu0 %v837
        %873 = vmatprep.subr.bf16.mxu0 0
        %874 = vmatpush1.bf16.msra.mxu0 %v836
        %875 = vmatprep.subr.bf16.mxu0 0
        %876 = vmatpush1.bf16.msra.mxu0 %v835
        %877 = vmatprep.subr.bf16.mxu0 0
        %878 = vmatpush1.bf16.msra.mxu0 %v834
        %879 = vmatprep.subr.bf16.mxu0 0
        %880 = vmatpush1.bf16.msra.mxu0 %v833
        %881 = vmatprep.subr.bf16.mxu0 0
        %882 = vmatpush2.bf16.msra.mxu0 %v848
        %883 = vmatprep.subr.bf16.mxu0 0
        %884 = vmatpush2.bf16.msra.mxu0 %v847
        %885 = vmatprep.subr.bf16.mxu0 0
        %886 = vmatpush2.bf16.msra.mxu0 %v846
        %887 = vmatprep.subr.bf16.mxu0 0
        %888 = vmatpush2.bf16.msra.mxu0 %v845
        %889 = vmatprep.subr.bf16.mxu0 0
        %890 = vmatpush2.bf16.msra.mxu0 %v844
        %891 = vmatprep.subr.bf16.mxu0 0
        %892 = vmatpush2.bf16.msra.mxu0 %v843
        %893 = vmatprep.subr.bf16.mxu0 0
        %894 = vmatpush2.bf16.msra.mxu0 %v842
        %895 = vmatprep.subr.bf16.mxu0 0
        %896 = vmatpush2.bf16.msra.mxu0 %v841
        %897 = vmatprep.mubr.bf16.mxu0 %v729
        %898 = vmatmul.mubr.bf16.gmra.mxu0 %v728
        %v899 = vpop.f32.mrf.mxu0
        %v900 = vadd.f32 %v767, %v899
        %v901 = vpop.f32.mrf.mxu0
        %v902 = vpop.f32.mrf.mxu0
        %v903 = vadd.f32 %v767, %v902
        %v904 = vpop.f32.mrf.mxu0
        %905 = vdwg.mxu0
        %v906 = vsub.f32 0.0, %v900
        %v907 = vsub.f32 0.0, %v903
        %v908 = vmul.f32 %v906, 1.442695
        %v909 = vpow.pop %v908
        %v910 = vmul.f32 %v907, 1.442695
        %v911 = vpow.pop %v910
        %v912 = vadd.f32 %v909, 1.0
        %v913 = vadd.f32 %v911, 1.0
        %v914 = vrcp.pop %v912
        %v915 = vrcp.pop %v913
        %vm916 = vcmask 64512
        %917 = vst.msk [vmem:[%s314] sm:$0xff] %vm916, %v914
        %918 = vst.msk [vmem:[%s314 + $0x8] sm:$0xff] %vm916, %v915
        %s919 = smul.u32 2, %s22
        %p920 = scmp.lt.s32.totalorder %s919, 3
        %s921 = scalar_select %p920, %s919, 3
        %s922 = smul.addr %s921, 8
        %s923 = scalar_lea.vmem %s7, %s922
        // Predicated region
        $region57: #{tpu_custom_call.1} parent=47 // pred_check
          %p924 = pneg %p192
        $region58: #{tpu_custom_call.1} parent=47 // pred_check_branch
          %926 = sbr.rel (%p924) target = $region60
        $region59: #{tpu_custom_call.1} parent=47 // pred_region
          %s927 = smul.u32 2, %s22
        $region60: #{tpu_custom_call.1} parent=47 // pred_fallthru
          _
      $region48: #{tpu_custom_call.1} parent=5 // pred_fallthru
        _
      %p928 = scmp.le.s32.totalorder 2, %s17
      // Predicated region
      $region61: #{tpu_custom_call.1} parent=5 // pred_check
        %p929 = pneg %p928
      $region62: #{tpu_custom_call.1} parent=5 // pred_check_branch
        %931 = sbr.rel (%p929) target = $region64
      $region63: #{tpu_custom_call.1} parent=5 // pred_region
        %s932 = ssub.s32 %s17, 2
        // Predicated region
        $region65: #{tpu_custom_call.1} parent=63 // pred_check
          %p933 = pneg %p198
        $region66: #{tpu_custom_call.1} parent=63 // pred_check_branch
          %935 = sbr.rel (%p933) target = $region68
        $region67: #{tpu_custom_call.1} parent=63 // pred_region
          %s936 = smul.u32 2, %s23
          %p937 = scmp.lt.s32.totalorder %s936, 3
          %s938 = scalar_select %p937, %s936, 3
          %s939 = smul.addr %s938, 8
          %s940 = scalar_lea.vmem %s7, %s939
        $region68: #{tpu_custom_call.1} parent=63 // pred_fallthru
          _
      $region64: #{tpu_custom_call.1} parent=5 // pred_fallthru
        _
    $region6: #{tpu_custom_call.1} parent=1 // loop_footer
      %s21 = sadd.s32 1, %s17
    $region7: #{tpu_custom_call.1} parent=1 // loop_footer_branch
      %16 = sbr.rel target = $region3
    $region8: #{tpu_custom_call.1} parent=1 // loop_exit
      _
    %941 = vsyncpa [#allocation3], 1
    %s942 = scalar_lea.sflag [#allocation3], 1
    %943 = vsyncpa %s942, 1
    %944 = vsyncpa [#allocation5], 1

</llo_original>
